<compile_context>
chip_gen: v7x
topology: tpu7x:2x2x1
jax: 0.10.0
libtpu: 0.0.40
codegen_flags: <defaults>
</compile_context>

<pallas_src>
import jax
import jax.numpy as jnp
from jax.experimental import pallas as pl
from jax.experimental.pallas import tpu as pltpu

N_LAYERS = 4
NP = 128          # padded lane (fan-out) dim -> lane-dense activations & output
ROW_ALIGN = 16    # batch-tile row alignment (full (16,128) bf16 output tiles)
TB_CAP = 1024     # max rows per grid step


def _round_up(n, m):
    return ((n + m - 1) // m) * m


def _cdiv(a, b):
    return -(-a // b)


def _mlp_kernel(x_ref, w_ref, b_ref, o_ref):
    # x_ref: (TB, F)        raw features for this batch tile
    # w_ref: (4, KP, 128)   zero-padded weight slab (layer, in, out), KP = 8
    # b_ref: (4, 128)       zero-padded bias slab
    # o_ref: (TB, 128)      lane-dense output block (real logits in [:, :out_f])
    f32 = jnp.float32
    f_in = x_ref.shape[1]      # static feature count (<= KP)
    kp = w_ref.shape[1]        # static padded contraction width (8)

    h = jnp.tanh(x_ref[...])                                                  # (TB, F)
    # layer 1: contract over the real F rows of the padded slab
    h = jnp.dot(h, w_ref[0, :f_in, :], preferred_element_type=f32) + b_ref[0:1, :]
    h = jnp.tanh(h)                                                           # (TB, NP)
    # layers 2-3: only the first KP lanes can be nonzero after tanh
    h = jnp.dot(h[:, :kp], w_ref[1], preferred_element_type=f32) + b_ref[1:2, :]
    h = jnp.tanh(h)
    h = jnp.dot(h[:, :kp], w_ref[2], preferred_element_type=f32) + b_ref[2:3, :]
    # sigmoid via EUP tanh (no VALU divide): sigmoid(z) = 0.5 * (1 + tanh(z/2))
    # padded 0.5-lanes hit zero-padded weight rows in w_ref[3], so they are inert.
    h = 0.5 * (jnp.tanh(0.5 * h) + 1.0)
    out = jnp.dot(h[:, :kp], w_ref[3], preferred_element_type=f32) + b_ref[3:4, :]
    o_ref[...] = out.astype(o_ref.dtype)


def mlp_forward(x, w_slab, b_slab, out_features, *, store_dtype=jnp.bfloat16):
    """x: (B, F) f32.  w_slab: (4, KP, 128) f32.  b_slab: (4, 128) f32."""
    B, F = x.shape
    n_layers, kp, np_lanes = w_slab.shape
    assert np_lanes == NP and F <= kp

    # Balanced batch tiling: (near-)equal, 16-aligned tiles; padding < ROW_ALIGN/tile.
    num_tiles = max(1, _cdiv(B, TB_CAP))
    if B >= 2 * 128:
        # Ensure >= 2 grid steps so both v7x TensorCores get work via the
        # "parallel" grid axis; costs at most one extra ~0.35us step on 1-TC parts.
        num_tiles = max(num_tiles, 2)
    TB = _round_up(_cdiv(B, num_tiles), ROW_ALIGN)
    Bp = TB * num_tiles
    if Bp != B:
        x = jnp.pad(x, ((0, Bp - B), (0, 0)))

    out = pl.pallas_call(
        _mlp_kernel,
        out_shape=jax.ShapeDtypeStruct((Bp, NP), store_dtype),
        grid=(num_tiles,),
        in_specs=[
            pl.BlockSpec((TB, F), lambda i: (i, 0)),                 # moving batch tile
            pl.BlockSpec((n_layers, kp, NP), lambda i: (0, 0, 0)),   # resident weights
            pl.BlockSpec((n_layers, NP), lambda i: (0, 0)),          # resident biases
        ],
        out_specs=pl.BlockSpec((TB, NP), lambda i: (i, 0)),
        compiler_params=pltpu.CompilerParams(
            dimension_semantics=("parallel",)),                      # megacore on v7x
    )(x, w_slab, b_slab)

    return out[:B, :out_features].astype(jnp.float32)


def init_params(key, input_features, output_feature):
    """Deterministic init matching nn.Linear shapes (stored as (in,out) / (1,out))."""
    dims = [input_features, 5, 4, 3, output_feature]
    params = {}
    for i in range(N_LAYERS):
        key, kw, kb = jax.random.split(key, 3)
        fan_in, fan_out = dims[i], dims[i + 1]
        bound = 1.0 / jnp.sqrt(jnp.float32(fan_in))
        # PyTorch Linear weight is (out, in); keep (in, out) so kernel does x @ W.
        params[f"w{i+1}"] = jax.random.uniform(
            kw, (fan_in, fan_out), jnp.float32, -bound, bound)
        params[f"b{i+1}"] = jax.random.uniform(
            kb, (1, fan_out), jnp.float32, -bound, bound)
    return params


def pack_params(params, input_features):
    """Zero-pad and stack the 4 layers into one (4,KP,128) weight slab + (4,128) bias slab."""
    kp = _round_up(max(input_features, 5), 8)   # max fan-in across layers, 8-aligned
    w_slab = jnp.stack([
        jnp.pad(params[f"w{i+1}"],
                ((0, kp - params[f"w{i+1}"].shape[0]),
                 (0, NP - params[f"w{i+1}"].shape[1])))
        for i in range(N_LAYERS)])                          # (4, KP, 128)
    b_slab = jnp.stack([
        jnp.pad(params[f"b{i+1}"][0],
                (0, NP - params[f"b{i+1}"].shape[1]))
        for i in range(N_LAYERS)])                          # (4, 128)
    return w_slab, b_slab


if __name__ == "__main__":
    key = jax.random.PRNGKey(0)
    input_features = 8    # diabetes.csv has 8 feature columns
    output_feature = 2
    batch = 8

    kx, kparam = jax.random.split(key)
    x = jax.random.normal(kx, (batch, input_features), jnp.float32)
    params = init_params(kparam, input_features, output_feature)
    w_slab, b_slab = pack_params(params, input_features)

    out = mlp_forward(x, w_slab, b_slab, output_feature)
    jax.block_until_ready(out)

    def reference(xv):
        h = jnp.tanh(xv)
        h = jnp.tanh(h @ params["w1"] + params["b1"])
        h = jnp.tanh(h @ params["w2"] + params["b2"])
        h = jax.nn.sigmoid(h @ params["w3"] + params["b3"])
        return h @ params["w4"] + params["b4"]

    ref = reference(x)
    assert out.shape == (batch, output_feature)
    # bf16 final store introduces <= ~0.4% rounding on the (tanh/sigmoid-bounded) logits
    assert jnp.allclose(out, ref, atol=1e-2, rtol=1e-2), "mismatch vs reference"

    # Also exercise the multi-tile ("parallel", 2-step grid) path once.
    x2 = jax.random.normal(jax.random.PRNGKey(1), (300, input_features), jnp.float32)
    out2 = mlp_forward(x2, w_slab, b_slab, output_feature)
    jax.block_until_ready(out2)
    assert out2.shape == (300, output_feature)
    assert jnp.allclose(out2, reference(x2), atol=1e-2, rtol=1e-2), "mismatch (multi-tile)"

    print("KERNEL_OK")
</pallas_src>

<mosaic_0001>
module attributes {stable_mosaic.version = 11 : i64} {
  func.func @_mlp_kernel(%arg0: i32, %arg1: memref<16x8xf32, #tpu.memory_space<vmem>>, %arg2: memref<4x8x128xf32, #tpu.memory_space<vmem>>, %arg3: memref<4x128xf32, #tpu.memory_space<vmem>>, %arg4: memref<16x128xbf16, #tpu.memory_space<vmem>>) attributes {dimension_semantics = [#tpu.dimension_semantics<parallel>], iteration_bounds = array<i64: 1>, scalar_prefetch = 0 : i64, scratch_operands = 0 : i64, tpu.core_type = #tpu.core_type<tc>, window_params = [{transform_indices = @transform_0, window_bounds = array<i64: 16, 8>}, {pipeline_mode = #tpu.pipeline_mode<synchronous>, transform_indices = @transform_1, window_bounds = array<i64: 4, 8, 128>}, {pipeline_mode = #tpu.pipeline_mode<synchronous>, transform_indices = @transform_2, window_bounds = array<i64: 4, 128>}, {transform_indices = @transform_3, window_bounds = array<i64: 16, 128>}]} {
    %c0 = arith.constant 0 : index
    %c0_0 = arith.constant 0 : index
    %0 = vector.load %arg1[%c0, %c0_0] : memref<16x8xf32, #tpu.memory_space<vmem>>, vector<16x8xf32>
    %1 = math.tanh %0 : vector<16x8xf32>
    %c0_1 = arith.constant 0 : index
    %c0_2 = arith.constant 0 : index
    %c0_3 = arith.constant 0 : index
    %2 = vector.load %arg2[%c0_1, %c0_2, %c0_3] : memref<4x8x128xf32, #tpu.memory_space<vmem>>, vector<1x8x128xf32>
    %3 = vector.shape_cast %2 : vector<1x8x128xf32> to vector<8x128xf32>
    %cst = arith.constant dense<0.000000e+00> : vector<16x128xf32>
    %4 = tpu.matmul %1, %3, %cst {dimension_numbers = #tpu.dot_dimension_numbers<[1], [0], [0], [1], [0, 0, 1, 1], [], []>} : vector<16x8xf32>, vector<8x128xf32>, vector<16x128xf32> -> vector<16x128xf32>
    %c0_4 = arith.constant 0 : index
    %c0_5 = arith.constant 0 : index
    %5 = vector.load %arg3[%c0_4, %c0_5] : memref<4x128xf32, #tpu.memory_space<vmem>>, vector<1x128xf32>
    %6 = vector.broadcast %5 : vector<1x128xf32> to vector<16x128xf32>
    %7 = arith.addf %4, %6 : vector<16x128xf32>
    %8 = math.tanh %7 : vector<16x128xf32>
    %9 = vector.extract_strided_slice %8 {offsets = [0, 0], sizes = [16, 8], strides = [1, 1]} : vector<16x128xf32> to vector<16x8xf32>
    %c1 = arith.constant 1 : index
    %c0_6 = arith.constant 0 : index
    %c0_7 = arith.constant 0 : index
    %10 = vector.load %arg2[%c1, %c0_6, %c0_7] : memref<4x8x128xf32, #tpu.memory_space<vmem>>, vector<1x8x128xf32>
    %11 = vector.shape_cast %10 : vector<1x8x128xf32> to vector<8x128xf32>
    %cst_8 = arith.constant dense<0.000000e+00> : vector<16x128xf32>
    %12 = tpu.matmul %9, %11, %cst_8 {dimension_numbers = #tpu.dot_dimension_numbers<[1], [0], [0], [1], [0, 0, 1, 1], [], []>} : vector<16x8xf32>, vector<8x128xf32>, vector<16x128xf32> -> vector<16x128xf32>
    %c1_9 = arith.constant 1 : index
    %c0_10 = arith.constant 0 : index
    %13 = vector.load %arg3[%c1_9, %c0_10] : memref<4x128xf32, #tpu.memory_space<vmem>>, vector<1x128xf32>
    %14 = vector.broadcast %13 : vector<1x128xf32> to vector<16x128xf32>
    %15 = arith.addf %12, %14 : vector<16x128xf32>
    %16 = math.tanh %15 : vector<16x128xf32>
    %17 = vector.extract_strided_slice %16 {offsets = [0, 0], sizes = [16, 8], strides = [1, 1]} : vector<16x128xf32> to vector<16x8xf32>
    %c2 = arith.constant 2 : index
    %c0_11 = arith.constant 0 : index
    %c0_12 = arith.constant 0 : index
    %18 = vector.load %arg2[%c2, %c0_11, %c0_12] : memref<4x8x128xf32, #tpu.memory_space<vmem>>, vector<1x8x128xf32>
    %19 = vector.shape_cast %18 : vector<1x8x128xf32> to vector<8x128xf32>
    %cst_13 = arith.constant dense<0.000000e+00> : vector<16x128xf32>
    %20 = tpu.matmul %17, %19, %cst_13 {dimension_numbers = #tpu.dot_dimension_numbers<[1], [0], [0], [1], [0, 0, 1, 1], [], []>} : vector<16x8xf32>, vector<8x128xf32>, vector<16x128xf32> -> vector<16x128xf32>
    %c2_14 = arith.constant 2 : index
    %c0_15 = arith.constant 0 : index
    %21 = vector.load %arg3[%c2_14, %c0_15] : memref<4x128xf32, #tpu.memory_space<vmem>>, vector<1x128xf32>
    %22 = vector.broadcast %21 : vector<1x128xf32> to vector<16x128xf32>
    %23 = arith.addf %20, %22 : vector<16x128xf32>
    %cst_16 = arith.constant 5.000000e-01 : f32
    %24 = vector.broadcast %cst_16 : f32 to vector<16x128xf32>
    %25 = arith.mulf %24, %23 : vector<16x128xf32>
    %26 = math.tanh %25 : vector<16x128xf32>
    %cst_17 = arith.constant 1.000000e+00 : f32
    %27 = vector.broadcast %cst_17 : f32 to vector<16x128xf32>
    %28 = arith.addf %26, %27 : vector<16x128xf32>
    %cst_18 = arith.constant 5.000000e-01 : f32
    %29 = vector.broadcast %cst_18 : f32 to vector<16x128xf32>
    %30 = arith.mulf %29, %28 : vector<16x128xf32>
    %31 = vector.extract_strided_slice %30 {offsets = [0, 0], sizes = [16, 8], strides = [1, 1]} : vector<16x128xf32> to vector<16x8xf32>
    %c3 = arith.constant 3 : index
    %c0_19 = arith.constant 0 : index
    %c0_20 = arith.constant 0 : index
    %32 = vector.load %arg2[%c3, %c0_19, %c0_20] : memref<4x8x128xf32, #tpu.memory_space<vmem>>, vector<1x8x128xf32>
    %33 = vector.shape_cast %32 : vector<1x8x128xf32> to vector<8x128xf32>
    %cst_21 = arith.constant dense<0.000000e+00> : vector<16x128xf32>
    %34 = tpu.matmul %31, %33, %cst_21 {dimension_numbers = #tpu.dot_dimension_numbers<[1], [0], [0], [1], [0, 0, 1, 1], [], []>} : vector<16x8xf32>, vector<8x128xf32>, vector<16x128xf32> -> vector<16x128xf32>
    %c3_22 = arith.constant 3 : index
    %c0_23 = arith.constant 0 : index
    %35 = vector.load %arg3[%c3_22, %c0_23] : memref<4x128xf32, #tpu.memory_space<vmem>>, vector<1x128xf32>
    %36 = vector.broadcast %35 : vector<1x128xf32> to vector<16x128xf32>
    %37 = arith.addf %34, %36 : vector<16x128xf32>
    %38 = arith.truncf %37 : vector<16x128xf32> to vector<16x128xbf16>
    %c0_24 = arith.constant 0 : index
    %c0_25 = arith.constant 0 : index
    %39 = vector.load %arg4[%c0_24, %c0_25] : memref<16x128xbf16, #tpu.memory_space<vmem>>, vector<16x128xbf16>
    tpu.vector_store %arg4[%c0_24, %c0_25], %38 {strides = array<i32>} : memref<16x128xbf16, #tpu.memory_space<vmem>>, vector<16x128xbf16>,
    return
  }
  func.func @transform_0(%arg0: i32) -> (i32, i32) {
    %c0_i32 = arith.constant 0 : i32
    %c0_i32_0 = arith.constant 0 : i32
    return %arg0, %c0_i32 : i32, i32
  }
  func.func @transform_1(%arg0: i32) -> (i32, i32, i32) {
    %c0_i32 = arith.constant 0 : i32
    %c0_i32_0 = arith.constant 0 : i32
    %c0_i32_1 = arith.constant 0 : i32
    %c0_i32_2 = arith.constant 0 : i32
    return %c0_i32, %c0_i32_0, %c0_i32_1 : i32, i32, i32
  }
  func.func @transform_2(%arg0: i32) -> (i32, i32) {
    %c0_i32 = arith.constant 0 : i32
    %c0_i32_0 = arith.constant 0 : i32
    %c0_i32_1 = arith.constant 0 : i32
    return %c0_i32, %c0_i32_0 : i32, i32
  }
  func.func @transform_3(%arg0: i32) -> (i32, i32) {
    %c0_i32 = arith.constant 0 : i32
    %c0_i32_0 = arith.constant 0 : i32
    return %arg0, %c0_i32 : i32, i32
  }
}

</mosaic_0001>

<llo_original>
// kernel: tpu_custom_call.1
$region0: #{tpu_custom_call.1}
  #allocation0 [shape = 'u32[]', space=smem, size = 0x4, offset = 0x4, fixed_abs, tag = 'smem constant byte address 0x4 - core index']
  #allocation1 [shape = 'u32[144,128]{1,0:T(1,128)}', space=vmem, size = 0x12000, scoped, tag = 'internal scratch']
  %s0 = inlined_call_operand.vmem [shape: f32[16,8], index: 0, kind: input, shape index: {}]
  %s1 = inlined_call_operand.hbm [shape: f32[4,8,128], index: 1, kind: input, shape index: {}]
  %s2 = inlined_call_operand.vmem [shape: f32[4,128], index: 2, kind: input, shape index: {}]
  %s3 = inlined_call_operand.hbm [shape: bf16[16,128], index: 3, kind: output, shape index: {}]
  %s4 = sld [smem:[#allocation0]]
  $region26: #{tpu_custom_call.1} parent=0
    _
  %s6 = ssub.s32 1, %s4
  %s7 = scalar_select 0, %s6, %s4
  $region1: #{tpu_custom_call.1} parent=0
    #allocation2 [shape = 'u8[16384]{0}', space=vmem, size = 0x4000, scoped, tag = 'input window, operand 1, single buffered']
    #allocation3 [shape = 's32[1]{0}', space=sflag, size = 0x4, scoped, tag = 'scoped memory for tpu_custom_call.1']
    #allocation4 [shape = 's32[1]{0}', space=sflag, size = 0x4, scoped, tag = 'scoped memory for tpu_custom_call.1']
    #allocation5 [shape = 'u8[4096]{0}', space=vmem, size = 0x1000, scoped, tag = 'output window, operand 0, single buffered']
    %8 = vsyncpa [#allocation3], 0
    %9 = vsyncpa [#allocation4], 0
    // Predicated region
    $region2: #{tpu_custom_call.1} parent=1 // pred_check
      _
    $region3: #{tpu_custom_call.1} parent=1 // pred_check_branch
      %11 = sbr.rel (0) target = $region5
    $region4: #{tpu_custom_call.1} parent=1 // pred_region
      _
    $region5: #{tpu_custom_call.1} parent=1 // pred_fallthru
      _
    // Predicated region
    $region6: #{tpu_custom_call.1} parent=1 // pred_check
      _
    $region7: #{tpu_custom_call.1} parent=1 // pred_check_branch
      %13 = sbr.rel (0) target = $region9
    $region8: #{tpu_custom_call.1} parent=1 // pred_region
      %s15 = ssub.s32 512, 512
      %16 = vsyncadd [#allocation3], %s15
      %s17 = sshll.u32 [#allocation2], 4
      %s18 = int_to_ptr.vmem [resolvable:$true] %s17
      %23 = dma.hbm_to_vmem [thread:$0]  %s1, 512, %s18, [#allocation3], 128, 128, 8
    $region9: #{tpu_custom_call.1} parent=1 // pred_fallthru
      _
    // Predicated region
    $region10: #{tpu_custom_call.1} parent=1 // pred_check
      _
    $region11: #{tpu_custom_call.1} parent=1 // pred_check_branch
      %25 = sbr.rel (0) target = $region13
    $region12: #{tpu_custom_call.1} parent=1 // pred_region
      _
    $region13: #{tpu_custom_call.1} parent=1 // pred_fallthru
      _
    // Predicated region
    $region14: #{tpu_custom_call.1} parent=1 // pred_check
      _
    $region15: #{tpu_custom_call.1} parent=1 // pred_check_branch
      %27 = sbr.rel (0) target = $region17
    $region16: #{tpu_custom_call.1} parent=1 // pred_region
      %28 = dma.done [#allocation3], 512
    $region17: #{tpu_custom_call.1} parent=1 // pred_fallthru
      _
    %v29 = vld [vmem:[%s0] sm:$0xff]
    %v30 = vld [vmem:[%s0 + $0x8] sm:$0xff]
    %v31 = vtanh.pop %v29
    %v32 = vtanh.pop %v30
    %v33 = vld [vmem:[#allocation2] sm:$0xff]
    %v34 = vld [vmem:[%s2] sm:$0x1]
    %v35 = vlaneseq
    %v36 = vshrl.u32 %v35, 7
    %v37 = vsub.s32 0, %v36
    %v38 = vrot.slane %v34, %v37
    %vm39 = vcmask 64512
    %v41 = vsel %vm39, %v31, 0
    %v44 = vsel %vm39, %v32, 0
    %46 = vmatprep.subr.mxu0 0.0
    %47 = vmatpush1.msra.mxu0 %v33
    %48 = vmatprep.subr.mxu0 0.0
    %49 = vmatpush1.msra.mxu0 0.0
    %50 = vmatprep.subr.mxu0 0.0
    %51 = vmatpush1.msra.mxu0 0.0
    %52 = vmatprep.subr.mxu0 0.0
    %53 = vmatpush1.msra.mxu0 0.0
    %54 = vmatprep.subr.mxu0 0.0
    %55 = vmatpush1.msra.mxu0 0.0
    %56 = vmatprep.subr.mxu0 0.0
    %57 = vmatpush1.msra.mxu0 0.0
    %58 = vmatprep.subr.mxu0 0.0
    %59 = vmatpush1.msra.mxu0 0.0
    %60 = vmatprep.subr.mxu0 0.0
    %61 = vmatpush1.msra.mxu0 0.0
    %62 = vmatprep.subr.mxu0 0.0
    %63 = vmatpush1.msra.mxu0 0.0
    %64 = vmatprep.subr.mxu0 0.0
    %65 = vmatpush1.msra.mxu0 0.0
    %66 = vmatprep.subr.mxu0 0.0
    %67 = vmatpush1.msra.mxu0 0.0
    %68 = vmatprep.subr.mxu0 0.0
    %69 = vmatpush1.msra.mxu0 0.0
    %70 = vmatprep.subr.mxu0 0.0
    %71 = vmatpush1.msra.mxu0 0.0
    %72 = vmatprep.subr.mxu0 0.0
    %73 = vmatpush1.msra.mxu0 0.0
    %74 = vmatprep.subr.mxu0 0.0
    %75 = vmatpush1.msra.mxu0 0.0
    %76 = vmatprep.subr.mxu0 0.0
    %77 = vmatpush1.msra.mxu0 0.0
    %78 = vmatprep.subr.mxu0 0.0
    %79 = vmatpush1.msra.mxu0 0.0
    %80 = vmatprep.subr.mxu0 0.0
    %81 = vmatpush1.msra.mxu0 0.0
    %82 = vmatprep.subr.mxu0 0.0
    %83 = vmatpush1.msra.mxu0 0.0
    %84 = vmatprep.subr.mxu0 0.0
    %85 = vmatpush1.msra.mxu0 0.0
    %86 = vmatprep.subr.mxu0 0.0
    %87 = vmatpush1.msra.mxu0 0.0
    %88 = vmatprep.subr.mxu0 0.0
    %89 = vmatpush1.msra.mxu0 0.0
    %90 = vmatprep.subr.mxu0 0.0
    %91 = vmatpush1.msra.mxu0 0.0
    %92 = vmatprep.subr.mxu0 0.0
    %93 = vmatpush1.msra.mxu0 0.0
    %94 = vmatprep.subr.mxu0 0.0
    %95 = vmatpush1.msra.mxu0 0.0
    %96 = vmatprep.subr.mxu0 0.0
    %97 = vmatpush1.msra.mxu0 0.0
    %98 = vmatprep.subr.mxu0 0.0
    %99 = vmatpush1.msra.mxu0 0.0
    %100 = vmatprep.subr.mxu0 0.0
    %101 = vmatpush1.msra.mxu0 0.0
    %102 = vmatprep.subr.mxu0 0.0
    %103 = vmatpush1.msra.mxu0 0.0
    %104 = vmatprep.subr.mxu0 0.0
    %105 = vmatpush1.msra.mxu0 0.0
    %106 = vmatprep.subr.mxu0 0.0
    %107 = vmatpush1.msra.mxu0 0.0
    %108 = vmatprep.subr.mxu0 0.0
    %109 = vmatpush1.msra.mxu0 0.0
    %110 = vmatprep.mubr.f32.mxu0 0.0
    %111 = vmatmul.mubr.f32.gmra.mrb[0].mxu0 %v41
    %v112 = vpop.f32.mrb[0].mxu0
    %v113 = vadd.f32 %v38, %v112
    %v114 = vpop.f32.mrb[0].mxu0
    %115 = vmatprep.mubr.f32.mxu0 0.0
    %116 = vmatmul.mubr.f32.gmra.mrb[0].mxu0 %v44
    %v117 = vpop.f32.mrb[0].mxu0
    %v118 = vadd.f32 %v38, %v117
    %v119 = vpop.f32.mrb[0].mxu0
    %120 = vdwg.mxu0
    %v121 = vtanh.pop %v113
    %v122 = vtanh.pop %v118
    %s123 = scalar_lea.vmem [#allocation2], 8
    %v124 = vld [vmem:[%s123] sm:$0xff]
    %v125 = vld [vmem:[%s2 + $0x1] sm:$0x1]
    %v126 = vlaneseq
    %v127 = vshrl.u32 %v126, 7
    %v128 = vsub.s32 0, %v127
    %v129 = vrot.slane %v125, %v128
    %v131 = vsel %vm39, %v121, 0
    %v134 = vsel %vm39, %v122, 0
    %136 = vmatprep.subr.mxu0 0.0
    %137 = vmatpush1.msra.mxu0 %v124
    %138 = vmatprep.subr.mxu0 0.0
    %139 = vmatpush1.msra.mxu0 0.0
    %140 = vmatprep.subr.mxu0 0.0
    %141 = vmatpush1.msra.mxu0 0.0
    %142 = vmatprep.subr.mxu0 0.0
    %143 = vmatpush1.msra.mxu0 0.0
    %144 = vmatprep.subr.mxu0 0.0
    %145 = vmatpush1.msra.mxu0 0.0
    %146 = vmatprep.subr.mxu0 0.0
    %147 = vmatpush1.msra.mxu0 0.0
    %148 = vmatprep.subr.mxu0 0.0
    %149 = vmatpush1.msra.mxu0 0.0
    %150 = vmatprep.subr.mxu0 0.0
    %151 = vmatpush1.msra.mxu0 0.0
    %152 = vmatprep.subr.mxu0 0.0
    %153 = vmatpush1.msra.mxu0 0.0
    %154 = vmatprep.subr.mxu0 0.0
    %155 = vmatpush1.msra.mxu0 0.0
    %156 = vmatprep.subr.mxu0 0.0
    %157 = vmatpush1.msra.mxu0 0.0
    %158 = vmatprep.subr.mxu0 0.0
    %159 = vmatpush1.msra.mxu0 0.0
    %160 = vmatprep.subr.mxu0 0.0
    %161 = vmatpush1.msra.mxu0 0.0
    %162 = vmatprep.subr.mxu0 0.0
    %163 = vmatpush1.msra.mxu0 0.0
    %164 = vmatprep.subr.mxu0 0.0
    %165 = vmatpush1.msra.mxu0 0.0
    %166 = vmatprep.subr.mxu0 0.0
    %167 = vmatpush1.msra.mxu0 0.0
    %168 = vmatprep.subr.mxu0 0.0
    %169 = vmatpush1.msra.mxu0 0.0
    %170 = vmatprep.subr.mxu0 0.0
    %171 = vmatpush1.msra.mxu0 0.0
    %172 = vmatprep.subr.mxu0 0.0
    %173 = vmatpush1.msra.mxu0 0.0
    %174 = vmatprep.subr.mxu0 0.0
    %175 = vmatpush1.msra.mxu0 0.0
    %176 = vmatprep.subr.mxu0 0.0
    %177 = vmatpush1.msra.mxu0 0.0
    %178 = vmatprep.subr.mxu0 0.0
    %179 = vmatpush1.msra.mxu0 0.0
    %180 = vmatprep.subr.mxu0 0.0
    %181 = vmatpush1.msra.mxu0 0.0
    %182 = vmatprep.subr.mxu0 0.0
    %183 = vmatpush1.msra.mxu0 0.0
    %184 = vmatprep.subr.mxu0 0.0
    %185 = vmatpush1.msra.mxu0 0.0
    %186 = vmatprep.subr.mxu0 0.0
    %187 = vmatpush1.msra.mxu0 0.0
    %188 = vmatprep.subr.mxu0 0.0
    %189 = vmatpush1.msra.mxu0 0.0
    %190 = vmatprep.subr.mxu0 0.0
    %191 = vmatpush1.msra.mxu0 0.0
    %192 = vmatprep.subr.mxu0 0.0
    %193 = vmatpush1.msra.mxu0 0.0
    %194 = vmatprep.subr.mxu0 0.0
    %195 = vmatpush1.msra.mxu0 0.0
    %196 = vmatprep.subr.mxu0 0.0
    %197 = vmatpush1.msra.mxu0 0.0
    %198 = vmatprep.subr.mxu0 0.0
    %199 = vmatpush1.msra.mxu0 0.0
    %200 = vmatprep.mubr.f32.mxu0 0.0
    %201 = vmatmul.mubr.f32.gmra.mrb[0].mxu0 %v131
    %v202 = vpop.f32.mrb[0].mxu0
    %v203 = vadd.f32 %v129, %v202
    %v204 = vpop.f32.mrb[0].mxu0
    %205 = vmatprep.mubr.f32.mxu0 0.0
    %206 = vmatmul.mubr.f32.gmra.mrb[0].mxu0 %v134
    %v207 = vpop.f32.mrb[0].mxu0
    %v208 = vadd.f32 %v129, %v207
    %v209 = vpop.f32.mrb[0].mxu0
    %210 = vdwg.mxu0
    %v211 = vtanh.pop %v203
    %v212 = vtanh.pop %v208
    %s213 = scalar_lea.vmem [#allocation2], 16
    %v214 = vld [vmem:[%s213] sm:$0xff]
    %v215 = vld [vmem:[%s2 + $0x2] sm:$0x1]
    %v216 = vlaneseq
    %v217 = vshrl.u32 %v216, 7
    %v218 = vsub.s32 0, %v217
    %v219 = vrot.slane %v215, %v218
    %v221 = vsel %vm39, %v211, 0
    %v224 = vsel %vm39, %v212, 0
    %226 = vmatprep.subr.mxu0 0.0
    %227 = vmatpush1.msra.mxu0 %v214
    %228 = vmatprep.subr.mxu0 0.0
    %229 = vmatpush1.msra.mxu0 0.0
    %230 = vmatprep.subr.mxu0 0.0
    %231 = vmatpush1.msra.mxu0 0.0
    %232 = vmatprep.subr.mxu0 0.0
    %233 = vmatpush1.msra.mxu0 0.0
    %234 = vmatprep.subr.mxu0 0.0
    %235 = vmatpush1.msra.mxu0 0.0
    %236 = vmatprep.subr.mxu0 0.0
    %237 = vmatpush1.msra.mxu0 0.0
    %238 = vmatprep.subr.mxu0 0.0
    %239 = vmatpush1.msra.mxu0 0.0
    %240 = vmatprep.subr.mxu0 0.0
    %241 = vmatpush1.msra.mxu0 0.0
    %242 = vmatprep.subr.mxu0 0.0
    %243 = vmatpush1.msra.mxu0 0.0
    %244 = vmatprep.subr.mxu0 0.0
    %245 = vmatpush1.msra.mxu0 0.0
    %246 = vmatprep.subr.mxu0 0.0
    %247 = vmatpush1.msra.mxu0 0.0
    %248 = vmatprep.subr.mxu0 0.0
    %249 = vmatpush1.msra.mxu0 0.0
    %250 = vmatprep.subr.mxu0 0.0
    %251 = vmatpush1.msra.mxu0 0.0
    %252 = vmatprep.subr.mxu0 0.0
    %253 = vmatpush1.msra.mxu0 0.0
    %254 = vmatprep.subr.mxu0 0.0
    %255 = vmatpush1.msra.mxu0 0.0
    %256 = vmatprep.subr.mxu0 0.0
    %257 = vmatpush1.msra.mxu0 0.0
    %258 = vmatprep.subr.mxu0 0.0
    %259 = vmatpush1.msra.mxu0 0.0
    %260 = vmatprep.subr.mxu0 0.0
    %261 = vmatpush1.msra.mxu0 0.0
    %262 = vmatprep.subr.mxu0 0.0
    %263 = vmatpush1.msra.mxu0 0.0
    %264 = vmatprep.subr.mxu0 0.0
    %265 = vmatpush1.msra.mxu0 0.0
    %266 = vmatprep.subr.mxu0 0.0
    %267 = vmatpush1.msra.mxu0 0.0
    %268 = vmatprep.subr.mxu0 0.0
    %269 = vmatpush1.msra.mxu0 0.0
    %270 = vmatprep.subr.mxu0 0.0
    %271 = vmatpush1.msra.mxu0 0.0
    %272 = vmatprep.subr.mxu0 0.0
    %273 = vmatpush1.msra.mxu0 0.0
    %274 = vmatprep.subr.mxu0 0.0
    %275 = vmatpush1.msra.mxu0 0.0
    %276 = vmatprep.subr.mxu0 0.0
    %277 = vmatpush1.msra.mxu0 0.0
    %278 = vmatprep.subr.mxu0 0.0
    %279 = vmatpush1.msra.mxu0 0.0
    %280 = vmatprep.subr.mxu0 0.0
    %281 = vmatpush1.msra.mxu0 0.0
    %282 = vmatprep.subr.mxu0 0.0
    %283 = vmatpush1.msra.mxu0 0.0
    %284 = vmatprep.subr.mxu0 0.0
    %285 = vmatpush1.msra.mxu0 0.0
    %286 = vmatprep.subr.mxu0 0.0
    %287 = vmatpush1.msra.mxu0 0.0
    %288 = vmatprep.subr.mxu0 0.0
    %289 = vmatpush1.msra.mxu0 0.0
    %290 = vmatprep.mubr.f32.mxu0 0.0
    %291 = vmatmul.mubr.f32.gmra.mrb[0].mxu0 %v221
    %v292 = vpop.f32.mrb[0].mxu0
    %v293 = vadd.f32 %v219, %v292
    %v294 = vpop.f32.mrb[0].mxu0
    %295 = vmatprep.mubr.f32.mxu0 0.0
    %296 = vmatmul.mubr.f32.gmra.mrb[0].mxu0 %v224
    %v297 = vpop.f32.mrb[0].mxu0
    %v298 = vadd.f32 %v219, %v297
    %v299 = vpop.f32.mrb[0].mxu0
    %300 = vdwg.mxu0
    %v301 = vmul.f32 %v293, 0.5
    %v302 = vmul.f32 %v298, 0.5
    %v303 = vtanh.pop %v301
    %v304 = vtanh.pop %v302
    %v305 = vadd.f32 %v303, 1.0
    %v306 = vadd.f32 %v304, 1.0
    %v307 = vmul.f32 %v305, 0.5
    %v308 = vmul.f32 %v306, 0.5
    %s309 = scalar_lea.vmem [#allocation2], 24
    %v310 = vld [vmem:[%s309] sm:$0xff]
    %v311 = vld [vmem:[%s2 + $0x3] sm:$0x1]
    %v312 = vlaneseq
    %v313 = vshrl.u32 %v312, 7
    %v314 = vsub.s32 0, %v313
    %v315 = vrot.slane %v311, %v314
    %v317 = vsel %vm39, %v307, 0
    %v320 = vsel %vm39, %v308, 0
    %322 = vmatprep.subr.mxu0 0.0
    %323 = vmatpush1.msra.mxu0 %v310
    %324 = vmatprep.subr.mxu0 0.0
    %325 = vmatpush1.msra.mxu0 0.0
    %326 = vmatprep.subr.mxu0 0.0
    %327 = vmatpush1.msra.mxu0 0.0
    %328 = vmatprep.subr.mxu0 0.0
    %329 = vmatpush1.msra.mxu0 0.0
    %330 = vmatprep.subr.mxu0 0.0
    %331 = vmatpush1.msra.mxu0 0.0
    %332 = vmatprep.subr.mxu0 0.0
    %333 = vmatpush1.msra.mxu0 0.0
    %334 = vmatprep.subr.mxu0 0.0
    %335 = vmatpush1.msra.mxu0 0.0
    %336 = vmatprep.subr.mxu0 0.0
    %337 = vmatpush1.msra.mxu0 0.0
    %338 = vmatprep.subr.mxu0 0.0
    %339 = vmatpush1.msra.mxu0 0.0
    %340 = vmatprep.subr.mxu0 0.0
    %341 = vmatpush1.msra.mxu0 0.0
    %342 = vmatprep.subr.mxu0 0.0
    %343 = vmatpush1.msra.mxu0 0.0
    %344 = vmatprep.subr.mxu0 0.0
    %345 = vmatpush1.msra.mxu0 0.0
    %346 = vmatprep.subr.mxu0 0.0
    %347 = vmatpush1.msra.mxu0 0.0
    %348 = vmatprep.subr.mxu0 0.0
    %349 = vmatpush1.msra.mxu0 0.0
    %350 = vmatprep.subr.mxu0 0.0
    %351 = vmatpush1.msra.mxu0 0.0
    %352 = vmatprep.subr.mxu0 0.0
    %353 = vmatpush1.msra.mxu0 0.0
    %354 = vmatprep.subr.mxu0 0.0
    %355 = vmatpush1.msra.mxu0 0.0
    %356 = vmatprep.subr.mxu0 0.0
    %357 = vmatpush1.msra.mxu0 0.0
    %358 = vmatprep.subr.mxu0 0.0
    %359 = vmatpush1.msra.mxu0 0.0
    %360 = vmatprep.subr.mxu0 0.0
    %361 = vmatpush1.msra.mxu0 0.0
    %362 = vmatprep.subr.mxu0 0.0
    %363 = vmatpush1.msra.mxu0 0.0
    %364 = vmatprep.subr.mxu0 0.0
    %365 = vmatpush1.msra.mxu0 0.0
    %366 = vmatprep.subr.mxu0 0.0
    %367 = vmatpush1.msra.mxu0 0.0
    %368 = vmatprep.subr.mxu0 0.0
    %369 = vmatpush1.msra.mxu0 0.0
    %370 = vmatprep.subr.mxu0 0.0
    %371 = vmatpush1.msra.mxu0 0.0
    %372 = vmatprep.subr.mxu0 0.0
    %373 = vmatpush1.msra.mxu0 0.0
    %374 = vmatprep.subr.mxu0 0.0
    %375 = vmatpush1.msra.mxu0 0.0
    %376 = vmatprep.subr.mxu0 0.0
    %377 = vmatpush1.msra.mxu0 0.0
    %378 = vmatprep.subr.mxu0 0.0
    %379 = vmatpush1.msra.mxu0 0.0
    %380 = vmatprep.subr.mxu0 0.0
    %381 = vmatpush1.msra.mxu0 0.0
    %382 = vmatprep.subr.mxu0 0.0
    %383 = vmatpush1.msra.mxu0 0.0
    %384 = vmatprep.subr.mxu0 0.0
    %385 = vmatpush1.msra.mxu0 0.0
    %386 = vmatprep.mubr.f32.mxu0 0.0
    %387 = vmatmul.mubr.f32.gmra.mrb[0].mxu0 %v317
    %v388 = vpop.f32.mrb[0].mxu0
    %v389 = vadd.f32 %v315, %v388
    %v390 = vpop.f32.mrb[0].mxu0
    %391 = vmatprep.mubr.f32.mxu0 0.0
    %392 = vmatmul.mubr.f32.gmra.mrb[0].mxu0 %v320
    %v393 = vpop.f32.mrb[0].mxu0
    %v394 = vadd.f32 %v315, %v393
    %v395 = vpop.f32.mrb[0].mxu0
    %396 = vdwg.mxu0
    %v397 = vpack.c.bf16 %v394, %v389
    %v399 = vunpack.c.l.b16 %v397
    %v400 = vunpack.c.h.b16 %v397
    %v401 = vpack.c.b16 %v399, %v399
    %v402 = vpack.c.b16 %v400, %v400
    %405 = vst [vmem:[#allocation5] sm:$0xf] %v401
    %406 = vst [vmem:[#allocation5 + $0x4] sm:$0xf] %v402
    // Predicated region
    $region18: #{tpu_custom_call.1} parent=1 // pred_check
      _
    $region19: #{tpu_custom_call.1} parent=1 // pred_check_branch
      %408 = sbr.rel (0) target = $region21
    $region20: #{tpu_custom_call.1} parent=1 // pred_region
      %s410 = ssub.s32 128, 128
      %411 = vsyncadd [#allocation4], %s410
      %s412 = sshll.u32 [#allocation5], 4
      %s413 = int_to_ptr.vmem [resolvable:$true] %s412
      %418 = dma.vmem_to_hbm [thread:$0]  %s413, 128, %s3, [#allocation4], 64, 64, 4
    $region21: #{tpu_custom_call.1} parent=1 // pred_fallthru
      _
    // Predicated region
    $region22: #{tpu_custom_call.1} parent=1 // pred_check
      _
    $region23: #{tpu_custom_call.1} parent=1 // pred_check_branch
      %420 = sbr.rel (0) target = $region25
    $region24: #{tpu_custom_call.1} parent=1 // pred_region
      %421 = dma.done [#allocation4], 128
    $region25: #{tpu_custom_call.1} parent=1 // pred_fallthru
      _
    %422 = vsyncpa [#allocation3], 1
    %423 = vsyncpa [#allocation4], 1

</llo_original>
